<compile_context>
chip_gen: v6e
topology: v6e:2x2x1
jax: 0.10.0
libtpu: 0.0.40
codegen_flags: <defaults>
</compile_context>

<pallas_src>
import functools

import jax
import jax.numpy as jnp
from jax.experimental import pallas as pl
from jax.experimental.pallas import tpu as pltpu


# ---------------------------------------------------------------------------
# Interpolation-weight construction (runs once in the XLA wrapper, not per
# grid step).  crop / offset may be traced int32 scalars.
# ---------------------------------------------------------------------------
def _interp_weights(n_out, n_in, crop, offset):
    """Bilinear interpolation matrix (n_out, n_in), float32.

    Maps an n_out-sample output axis onto a `crop`-long window starting at
    `offset` inside an n_in-long input axis, torchvision v2.Resize semantics
    (align_corners=False).  crop <= n_out here, i.e. upscale only.
    """
    crop = jnp.asarray(crop, jnp.int32)
    offset = jnp.asarray(offset, jnp.int32)
    crop_f = crop.astype(jnp.float32)
    out_i = jnp.arange(n_out, dtype=jnp.float32)[:, None]        # (n_out, 1)
    in_r = jnp.arange(n_in, dtype=jnp.int32)[None, :]             # (1, n_in)
    src = (out_i + 0.5) * (crop_f / jnp.float32(n_out)) - 0.5
    src = jnp.clip(src, 0.0, crop_f - 1.0)
    i0 = jnp.floor(src)
    frac = src - i0
    lo = i0.astype(jnp.int32) + offset
    hi = jnp.minimum(lo + 1, crop - 1 + offset)
    # Rows/cols outside the crop window get zero weight; when lo == hi the two
    # contributions add back up to exactly 1.
    return (jnp.where(in_r == lo, 1.0 - frac, 0.0)
            + jnp.where(in_r == hi, frac, 0.0))


# ---------------------------------------------------------------------------
# Pallas kernel: pure matmuls, weights already built.
# ---------------------------------------------------------------------------
def _crop_resize_kernel(x_ref, wy_ref, wxt_ref, o_ref):
    # x_ref:   (Bt, C, H, W)  image dtype
    # wy_ref:  (T, H)         bf16   row-interp matrix
    # wxt_ref: (W, T)         bf16   column-interp matrix, pre-transposed
    # o_ref:   (Bt, C, T, T)  image dtype
    bt, nc, h, w = x_ref.shape
    t = o_ref.shape[-1]

    # Stage 1: contract the lane dim W.  M = Bt*C*H fills the MXU; the result
    # (rows grouped per (b, c)) is consumed by stage 2 without any relayout.
    x2d = x_ref[...].reshape(bt * nc * h, w).astype(jnp.bfloat16)
    t1 = jax.lax.dot_general(
        x2d, wxt_ref[...], (((1,), (0,)), ((), ())),
        preferred_element_type=jnp.float32)                 # (Bt*C*H, T) f32
    t1 = t1.astype(jnp.bfloat16)

    wy = wy_ref[...]                                        # (T, H) bf16
    # Stage 2: per (image, channel) canonical (T,H) @ (H,T) -> (T,T).
    for b in range(bt):
        for c in range(nc):
            r0 = (b * nc + c) * h
            o_ref[b, c] = jax.lax.dot_general(
                wy, t1[r0:r0 + h, :], (((1,), (0,)), ((), ())),
                preferred_element_type=jnp.float32).astype(o_ref.dtype)
    # TODO(synk): for T < 128 the (T, T) stores are lane-sparse; a lane-dense
    # packed output layout ((B, C, T*T) reshaped outside) would speed up the
    # store tail further.


# ---------------------------------------------------------------------------
# pallas_call wrapper (crop branch only).
# ---------------------------------------------------------------------------
@functools.partial(jax.jit, static_argnames=("target_size", "block_b"))
def crop_resize(image, crop_size, top, left, *, target_size, block_b=1):
    """Crop image[:, :, top:top+crop, left:left+crop] and bilinearly resize to
    (target_size, target_size).  crop_size/top/left may be traced scalars."""
    B, C, H, W = image.shape
    T = int(target_size)
    if B % block_b != 0:
        raise ValueError("block_b must divide the batch size")

    crop_size = jnp.asarray(crop_size, jnp.int32)
    top = jnp.asarray(top, jnp.int32)
    left = jnp.asarray(left, jnp.int32)

    # Batch-invariant interpolation matrices, built once (hoisted out of the
    # per-batch grid loop), bf16 for the MXU.
    wy = _interp_weights(T, H, crop_size, top).astype(jnp.bfloat16)        # (T, H)
    wxt = _interp_weights(T, W, crop_size, left).T.astype(jnp.bfloat16)    # (W, T)

    # Explicit VMEM budget: double-buffered I/O blocks + weights + in-kernel
    # intermediates (bf16 copy of x, f32+bf16 stage-1 result, f32 out temp).
    itemsize = image.dtype.itemsize
    io_bytes = (block_b * C * H * W + block_b * C * T * T) * itemsize
    w_bytes = (T * H + W * T) * 2
    scratch = (block_b * C * H * W * 2
               + block_b * C * H * T * 6
               + block_b * C * T * T * 4)
    vmem_limit = int(min(max(2 * (io_bytes + w_bytes) + scratch + (8 << 20),
                             16 << 20), 64 << 20))
    # TODO(synk): images too large for a (block_b, C, H, W) block under 64 MiB
    # (v7x physical VMEM) would additionally need channel/output-row tiling.

    return pl.pallas_call(
        _crop_resize_kernel,
        out_shape=jax.ShapeDtypeStruct((B, C, T, T), image.dtype),
        grid=(B // block_b,),
        in_specs=[
            pl.BlockSpec((block_b, C, H, W), lambda i: (i, 0, 0, 0)),
            pl.BlockSpec((T, H), lambda i: (0, 0)),   # constant block -> DMA'd once
            pl.BlockSpec((W, T), lambda i: (0, 0)),
        ],
        out_specs=pl.BlockSpec((block_b, C, T, T), lambda i: (i, 0, 0, 0)),
        compiler_params=pltpu.CompilerParams(
            dimension_semantics=("parallel",),
            vmem_limit_bytes=vmem_limit),
    )(image, wy, wxt)


def _pick_block_b(B, C, T):
    """Images per grid step: fuse several small images so the MXU M dimension
    (block_b*C*H) fills up and the ~0.35us/step overhead amortizes, but keep
    >= 2 grid steps when possible so both v7x TensorCores get work."""
    if T > 128:
        return 1
    bb = max(1, min(8, B // 2)) if B > 1 else 1
    while B % bb:
        bb -= 1
    return bb


# ---------------------------------------------------------------------------
# Module-equivalent transform.
# ---------------------------------------------------------------------------
@functools.partial(jax.jit, static_argnames=("min_size", "target_size", "p"))
def _random_crop_resize_transform(image, key, *, min_size, target_size, p):
    B, C, H, W = image.shape
    T = int(target_size)
    if 0.0 < p < 1.0 and (H, W) != (T, T):
        # The identity branch returns `image` unchanged, so both branches must
        # produce the same shape under jit.
        raise ValueError("input spatial size must equal target_size")

    if p <= 0.0:
        return image                     # identity: no kernel, no HBM traffic

    k1, k2, k3, k4 = jax.random.split(key, 4)
    # crop_size ~ U{min_size, ..., target_size - 1}  (randrange semantics).
    crop_size = jax.random.randint(k2, (), min_size, target_size,
                                   dtype=jnp.int32)
    # top/left ~ U{0, ..., H - crop}; bounds are traced, so sample via
    # floor(uniform * range) (u in [0,1) => result in {0, ..., range-1}).
    n_top = (H - crop_size + 1).astype(jnp.float32)
    n_left = (W - crop_size + 1).astype(jnp.float32)
    top = jnp.floor(jax.random.uniform(k3) * n_top).astype(jnp.int32)
    left = jnp.floor(jax.random.uniform(k4) * n_left).astype(jnp.int32)

    block_b = _pick_block_b(B, C, T)

    def crop_branch(img):
        return crop_resize(img, crop_size, top, left,
                           target_size=T, block_b=block_b)

    if p >= 1.0:
        return crop_branch(image)

    do_crop = jax.random.uniform(k1) < p
    # Only the taken branch executes at runtime: the (1-p) identity fraction
    # never launches the Pallas kernel and stays bit-exact.
    return jax.lax.cond(do_crop, crop_branch, lambda img: img, image)


class RandomCropResizeTransform:
    """JAX/Pallas port of the PyTorch module (no learned parameters)."""

    def __init__(self, min_size, target_size, p):
        if not (0 < min_size < target_size):
            raise ValueError("require 0 < min_size < target_size")
        self.min_size = int(min_size)
        self.target_size = int(target_size)
        self.p = float(p)

    def __call__(self, image, key):
        return _random_crop_resize_transform(
            image, key, min_size=self.min_size,
            target_size=self.target_size, p=self.p)
    # TODO(synk): like the reference module, one crop is applied to the whole
    # batch; integer image dtypes would need round-to-nearest on the store.


if __name__ == "__main__":
    key = jax.random.PRNGKey(0)
    k_img, k_rand, k_rand2 = jax.random.split(key, 3)

    B, C, target_size = 2, 4, 16
    min_size, p = 8, 0.5

    image = jax.random.uniform(
        k_img, (B, C, target_size, target_size), dtype=jnp.float32)

    # 1) Normal use (random branch, fully on-device, no host sync).
    transform = RandomCropResizeTransform(min_size=min_size,
                                          target_size=target_size, p=p)
    out = jax.block_until_ready(transform(image, k_rand))
    assert out.shape == (B, C, target_size, target_size)
    assert out.dtype == image.dtype
    assert bool(jnp.all(jnp.isfinite(out)))

    # 2) Force the crop path so the Pallas kernel definitely executes.
    forced = RandomCropResizeTransform(min_size=min_size,
                                       target_size=target_size, p=1.0)
    out2 = jax.block_until_ready(forced(image, k_rand2))
    assert out2.shape == (B, C, target_size, target_size)
    assert bool(jnp.all(jnp.isfinite(out2)))
    assert bool(jnp.all((out2 >= -0.05) & (out2 <= 1.05)))

    # 3) Kernel numerics check: full-window "crop" => exact 0/1 interp
    #    matrices, so the kernel must return the input up to bf16 rounding.
    ident_out = jax.block_until_ready(
        crop_resize(image, target_size, 0, 0,
                    target_size=target_size, block_b=1))
    assert bool(jnp.max(jnp.abs(ident_out - image)) < 1e-2)

    # 4) Identity branch (p=0) bypasses the kernel and is bit-exact.
    ident = RandomCropResizeTransform(min_size=min_size,
                                      target_size=target_size, p=0.0)
    out3 = jax.block_until_ready(ident(image, k_rand))
    assert bool(jnp.all(out3 == image))

    print("KERNEL_OK")
</pallas_src>

<mosaic_0001>
module attributes {stable_mosaic.version = 11 : i64} {
  func.func @_crop_resize_kernel(%arg0: i32, %arg1: memref<1x4x16x16xf32, #tpu.memory_space<vmem>>, %arg2: memref<16x16xbf16, #tpu.memory_space<vmem>>, %arg3: memref<16x16xbf16, #tpu.memory_space<vmem>>, %arg4: memref<1x4x16x16xf32, #tpu.memory_space<vmem>>) attributes {dimension_semantics = [#tpu.dimension_semantics<parallel>], iteration_bounds = array<i64: 2>, scalar_prefetch = 0 : i64, scratch_operands = 0 : i64, tpu.core_type = #tpu.core_type<tc>, window_params = [{transform_indices = @transform_0, window_bounds = array<i64: 1, 4, 16, 16>}, {pipeline_mode = #tpu.pipeline_mode<synchronous>, transform_indices = @transform_1, window_bounds = array<i64: 16, 16>}, {pipeline_mode = #tpu.pipeline_mode<synchronous>, transform_indices = @transform_2, window_bounds = array<i64: 16, 16>}, {transform_indices = @transform_3, window_bounds = array<i64: 1, 4, 16, 16>}]} {
    %c0 = arith.constant 0 : index
    %c0_0 = arith.constant 0 : index
    %c0_1 = arith.constant 0 : index
    %c0_2 = arith.constant 0 : index
    %0 = vector.load %arg1[%c0, %c0_0, %c0_1, %c0_2] : memref<1x4x16x16xf32, #tpu.memory_space<vmem>>, vector<1x4x16x16xf32>
    %1 = vector.shape_cast %0 : vector<1x4x16x16xf32> to vector<64x16xf32>
    %2 = arith.truncf %1 : vector<64x16xf32> to vector<64x16xbf16>
    %c0_3 = arith.constant 0 : index
    %c0_4 = arith.constant 0 : index
    %3 = vector.load %arg3[%c0_3, %c0_4] : memref<16x16xbf16, #tpu.memory_space<vmem>>, vector<16x16xbf16>
    %cst = arith.constant dense<0.000000e+00> : vector<64x16xf32>
    %4 = tpu.matmul %2, %3, %cst {dimension_numbers = #tpu.dot_dimension_numbers<[1], [0], [0], [1], [0, 0, 1, 1], [], []>} : vector<64x16xbf16>, vector<16x16xbf16>, vector<64x16xf32> -> vector<64x16xf32>
    %5 = arith.truncf %4 : vector<64x16xf32> to vector<64x16xbf16>
    %c0_5 = arith.constant 0 : index
    %c0_6 = arith.constant 0 : index
    %6 = vector.load %arg2[%c0_5, %c0_6] : memref<16x16xbf16, #tpu.memory_space<vmem>>, vector<16x16xbf16>
    %7 = vector.extract_strided_slice %5 {offsets = [0, 0], sizes = [16, 16], strides = [1, 1]} : vector<64x16xbf16> to vector<16x16xbf16>
    %cst_7 = arith.constant dense<0.000000e+00> : vector<16x16xf32>
    %8 = tpu.matmul %6, %7, %cst_7 {dimension_numbers = #tpu.dot_dimension_numbers<[1], [0], [0], [1], [0, 0, 1, 1], [], []>} : vector<16x16xbf16>, vector<16x16xbf16>, vector<16x16xf32> -> vector<16x16xf32>
    %c0_8 = arith.constant 0 : index
    %c0_9 = arith.constant 0 : index
    %c0_10 = arith.constant 0 : index
    %c0_11 = arith.constant 0 : index
    %9 = vector.load %arg4[%c0_8, %c0_9, %c0_10, %c0_11] : memref<1x4x16x16xf32, #tpu.memory_space<vmem>>, vector<1x1x16x16xf32>
    %10 = vector.shape_cast %9 : vector<1x1x16x16xf32> to vector<16x16xf32>
    %11 = vector.shape_cast %8 : vector<16x16xf32> to vector<1x1x16x16xf32>
    tpu.vector_store %arg4[%c0_8, %c0_9, %c0_10, %c0_11], %11 {strides = array<i32>} : memref<1x4x16x16xf32, #tpu.memory_space<vmem>>, vector<1x1x16x16xf32>,
    %12 = vector.extract_strided_slice %5 {offsets = [16, 0], sizes = [16, 16], strides = [1, 1]} : vector<64x16xbf16> to vector<16x16xbf16>
    %cst_12 = arith.constant dense<0.000000e+00> : vector<16x16xf32>
    %13 = tpu.matmul %6, %12, %cst_12 {dimension_numbers = #tpu.dot_dimension_numbers<[1], [0], [0], [1], [0, 0, 1, 1], [], []>} : vector<16x16xbf16>, vector<16x16xbf16>, vector<16x16xf32> -> vector<16x16xf32>
    %c0_13 = arith.constant 0 : index
    %c1 = arith.constant 1 : index
    %c0_14 = arith.constant 0 : index
    %c0_15 = arith.constant 0 : index
    %14 = vector.load %arg4[%c0_13, %c1, %c0_14, %c0_15] : memref<1x4x16x16xf32, #tpu.memory_space<vmem>>, vector<1x1x16x16xf32>
    %15 = vector.shape_cast %14 : vector<1x1x16x16xf32> to vector<16x16xf32>
    %16 = vector.shape_cast %13 : vector<16x16xf32> to vector<1x1x16x16xf32>
    tpu.vector_store %arg4[%c0_13, %c1, %c0_14, %c0_15], %16 {strides = array<i32>} : memref<1x4x16x16xf32, #tpu.memory_space<vmem>>, vector<1x1x16x16xf32>,
    %17 = vector.extract_strided_slice %5 {offsets = [32, 0], sizes = [16, 16], strides = [1, 1]} : vector<64x16xbf16> to vector<16x16xbf16>
    %cst_16 = arith.constant dense<0.000000e+00> : vector<16x16xf32>
    %18 = tpu.matmul %6, %17, %cst_16 {dimension_numbers = #tpu.dot_dimension_numbers<[1], [0], [0], [1], [0, 0, 1, 1], [], []>} : vector<16x16xbf16>, vector<16x16xbf16>, vector<16x16xf32> -> vector<16x16xf32>
    %c0_17 = arith.constant 0 : index
    %c2 = arith.constant 2 : index
    %c0_18 = arith.constant 0 : index
    %c0_19 = arith.constant 0 : index
    %19 = vector.load %arg4[%c0_17, %c2, %c0_18, %c0_19] : memref<1x4x16x16xf32, #tpu.memory_space<vmem>>, vector<1x1x16x16xf32>
    %20 = vector.shape_cast %19 : vector<1x1x16x16xf32> to vector<16x16xf32>
    %21 = vector.shape_cast %18 : vector<16x16xf32> to vector<1x1x16x16xf32>
    tpu.vector_store %arg4[%c0_17, %c2, %c0_18, %c0_19], %21 {strides = array<i32>} : memref<1x4x16x16xf32, #tpu.memory_space<vmem>>, vector<1x1x16x16xf32>,
    %22 = vector.extract_strided_slice %5 {offsets = [48, 0], sizes = [16, 16], strides = [1, 1]} : vector<64x16xbf16> to vector<16x16xbf16>
    %cst_20 = arith.constant dense<0.000000e+00> : vector<16x16xf32>
    %23 = tpu.matmul %6, %22, %cst_20 {dimension_numbers = #tpu.dot_dimension_numbers<[1], [0], [0], [1], [0, 0, 1, 1], [], []>} : vector<16x16xbf16>, vector<16x16xbf16>, vector<16x16xf32> -> vector<16x16xf32>
    %c0_21 = arith.constant 0 : index
    %c3 = arith.constant 3 : index
    %c0_22 = arith.constant 0 : index
    %c0_23 = arith.constant 0 : index
    %24 = vector.load %arg4[%c0_21, %c3, %c0_22, %c0_23] : memref<1x4x16x16xf32, #tpu.memory_space<vmem>>, vector<1x1x16x16xf32>
    %25 = vector.shape_cast %24 : vector<1x1x16x16xf32> to vector<16x16xf32>
    %26 = vector.shape_cast %23 : vector<16x16xf32> to vector<1x1x16x16xf32>
    tpu.vector_store %arg4[%c0_21, %c3, %c0_22, %c0_23], %26 {strides = array<i32>} : memref<1x4x16x16xf32, #tpu.memory_space<vmem>>, vector<1x1x16x16xf32>,
    return
  }
  func.func @transform_0(%arg0: i32) -> (i32, i32, i32, i32) {
    %c0_i32 = arith.constant 0 : i32
    %c0_i32_0 = arith.constant 0 : i32
    %c0_i32_1 = arith.constant 0 : i32
    %c0_i32_2 = arith.constant 0 : i32
    return %arg0, %c0_i32, %c0_i32_0, %c0_i32_1 : i32, i32, i32, i32
  }
  func.func @transform_1(%arg0: i32) -> (i32, i32) {
    %c0_i32 = arith.constant 0 : i32
    %c0_i32_0 = arith.constant 0 : i32
    %c0_i32_1 = arith.constant 0 : i32
    return %c0_i32, %c0_i32_0 : i32, i32
  }
  func.func @transform_2(%arg0: i32) -> (i32, i32) {
    %c0_i32 = arith.constant 0 : i32
    %c0_i32_0 = arith.constant 0 : i32
    %c0_i32_1 = arith.constant 0 : i32
    return %c0_i32, %c0_i32_0 : i32, i32
  }
  func.func @transform_3(%arg0: i32) -> (i32, i32, i32, i32) {
    %c0_i32 = arith.constant 0 : i32
    %c0_i32_0 = arith.constant 0 : i32
    %c0_i32_1 = arith.constant 0 : i32
    %c0_i32_2 = arith.constant 0 : i32
    return %arg0, %c0_i32, %c0_i32_0, %c0_i32_1 : i32, i32, i32, i32
  }
}

</mosaic_0001>

<llo_original>
// kernel: crop_resize.1
$region0: #{crop_resize.1}
  #allocation0 [shape = 'u32[]', space=smem, size = 0x4, offset = 0x4, fixed_abs, tag = 'smem constant byte address 0x4 - core index']
  #allocation1 [shape = 'u32[144,128]{1,0:T(1,128)}', space=vmem, size = 0x12000, scoped, tag = 'internal scratch']
  %s0 = inlined_call_operand.hbm [shape: f32[2,4,16,16], index: 0, kind: input, shape index: {}]
  %s1 = inlined_call_operand.vmem [shape: bf16[16,16], index: 1, kind: input, shape index: {}]
  %s2 = inlined_call_operand.vmem [shape: bf16[16,16], index: 2, kind: input, shape index: {}]
  %s3 = inlined_call_operand.hbm [shape: f32[2,4,16,16], index: 3, kind: output, shape index: {}]
  %s4 = sld [smem:[#allocation0]]
  $region49: #{crop_resize.1} parent=0
    _
  %s6 = ssub.s32 1, %s4
  %s7 = scalar_select 0, %s6, %s4
  $region1: #{crop_resize.1} parent=0
    #allocation2 [shape = 'u8[65536]{0}', space=vmem, size = 0x10000, scoped, tag = 'input window, operand 0']
    #allocation3 [shape = 's32[2]{0}', space=sflag, size = 0x8, scoped, tag = 'scoped memory for crop_resize.1']
    #allocation4 [shape = 's32[2]{0}', space=sflag, size = 0x8, scoped, tag = 'scoped memory for crop_resize.1']
    #allocation5 [shape = 'u8[65536]{0}', space=vmem, size = 0x10000, scoped, tag = 'output window, operand 0']
    %8 = vsyncpa [#allocation3], 0
    %s9 = scalar_lea.sflag [#allocation3], 1
    %10 = vsyncpa %s9, 0
    %11 = vsyncpa [#allocation4], 0
    %s12 = scalar_lea.sflag [#allocation4], 1
    %13 = vsyncpa %s12, 0
    loop: start=0, step=1, limit=4
    $region2: #{crop_resize.1} parent=1 // loop_pre_header
      _
    $region3: #{crop_resize.1} parent=1 // loop_header
      %s15 = sphi 0, %s19
      %p16 = scmp.ge.s32.totalorder %s15, 4
      %s25 = sphi 0, %s27
      %s28 = sphi 0, %s25
      %s29 = sphi 0, %s28
      %s45 = sphi 0, %s29
      %s49 = sphi 0, %s49
      %s51 = sphi 0, %s49
      %s52 = sphi 0, %s51
      %s66 = sphi 0, %s52
      %s70 = sphi 0, %s70
      %s72 = sphi 0, %s70
      %s73 = sphi 0, %s72
      %s87 = sphi 0, %s73
      %s93 = sphi 0, %s95
      %s96 = sphi 0, %s93
      %s97 = sphi 0, %s96
      %s113 = sphi 0, %s97
    $region4: #{crop_resize.1} parent=1 // loop_header_branch
      %18 = sbr.rel (%p16) target = $region8
    $region5: #{crop_resize.1} parent=1 // loop_body
      %s20 = ssub.s32 %s15, 1
      %s21 = ssub.s32 %s15, 2
      %s22 = sadd.s32 %s15, 1
      %s23 = ssub.s32 %s15, %s22
      %p24 = scmp.eq.s32.totalorder %s23, 0
      %s26 = sadd.s32 %s25, 1
      %s27 = scalar_select %p24, %s25, %s26
      %p30 = pneg %p24
      %p31 = scmp.eq.s32.totalorder %s15, 1
      %p32 = por %p30, %p31
      %p33 = scmp.ne.s32.totalorder %s25, %s28
      %p34 = scmp.eq.s32.totalorder %s15, 0
      %p35 = por %p33, %p34
      %p36 = scmp.ne.s32.totalorder %s25, %s28
      %p37 = scmp.eq.s32.totalorder %s20, 1
      %p38 = por %p36, %p37
      %p39 = scmp.ne.s32.totalorder %s28, %s29
      %p40 = scmp.eq.s32.totalorder %s20, 0
      %p41 = por %p39, %p40
      %p42 = scmp.ne.s32.totalorder %s28, %s29
      %p43 = scmp.eq.s32.totalorder %s21, 1
      %p44 = por %p42, %p43
      %p46 = scmp.ne.s32.totalorder %s29, %s45
      %p47 = scmp.eq.s32.totalorder %s21, 0
      %p48 = por %p46, %p47
      %s50 = sadd.s32 %s49, 1
      %p53 = scmp.eq.s32.totalorder %s15, 1
      %p54 = scmp.ne.s32.totalorder %s49, %s51
      %p55 = scmp.eq.s32.totalorder %s15, 0
      %p56 = por %p54, %p55
      %p57 = scmp.ne.s32.totalorder %s49, %s51
      %p58 = scmp.eq.s32.totalorder %s20, 1
      %p59 = por %p57, %p58
      %p60 = scmp.ne.s32.totalorder %s51, %s52
      %p61 = scmp.eq.s32.totalorder %s20, 0
      %p62 = por %p60, %p61
      %p63 = scmp.ne.s32.totalorder %s51, %s52
      %p64 = scmp.eq.s32.totalorder %s21, 1
      %p65 = por %p63, %p64
      %p67 = scmp.ne.s32.totalorder %s52, %s66
      %p68 = scmp.eq.s32.totalorder %s21, 0
      %p69 = por %p67, %p68
      %s71 = sadd.s32 %s70, 1
      %p74 = scmp.eq.s32.totalorder %s15, 1
      %p75 = scmp.ne.s32.totalorder %s70, %s72
      %p76 = scmp.eq.s32.totalorder %s15, 0
      %p77 = por %p75, %p76
      %p78 = scmp.ne.s32.totalorder %s70, %s72
      %p79 = scmp.eq.s32.totalorder %s20, 1
      %p80 = por %p78, %p79
      %p81 = scmp.ne.s32.totalorder %s72, %s73
      %p82 = scmp.eq.s32.totalorder %s20, 0
      %p83 = por %p81, %p82
      %p84 = scmp.ne.s32.totalorder %s72, %s73
      %p85 = scmp.eq.s32.totalorder %s21, 1
      %p86 = por %p84, %p85
      %p88 = scmp.ne.s32.totalorder %s73, %s87
      %p89 = scmp.eq.s32.totalorder %s21, 0
      %p90 = por %p88, %p89
      %s91 = ssub.s32 %s15, %s22
      %p92 = scmp.eq.s32.totalorder %s91, 0
      %s94 = sadd.s32 %s93, 1
      %s95 = scalar_select %p92, %s93, %s94
      %p98 = pneg %p92
      %p99 = scmp.eq.s32.totalorder %s15, 1
      %p100 = por %p98, %p99
      %p101 = scmp.ne.s32.totalorder %s93, %s96
      %p102 = scmp.eq.s32.totalorder %s15, 0
      %p103 = por %p101, %p102
      %p104 = scmp.ne.s32.totalorder %s93, %s96
      %p105 = scmp.eq.s32.totalorder %s20, 1
      %p106 = por %p104, %p105
      %p107 = scmp.ne.s32.totalorder %s96, %s97
      %p108 = scmp.eq.s32.totalorder %s20, 0
      %p109 = por %p107, %p108
      %p110 = scmp.ne.s32.totalorder %s96, %s97
      %p111 = scmp.eq.s32.totalorder %s21, 1
      %p112 = por %p110, %p111
      %p114 = scmp.ne.s32.totalorder %s97, %s113
      %p115 = scmp.eq.s32.totalorder %s21, 0
      %p116 = por %p114, %p115
      %p117 = scmp.le.s32.totalorder 1, %s15
      %p118 = scmp.lt.s32.totalorder %s15, 3
      %p119 = pnand %p117, %p118
      %p120 = pneg %p119
      // Predicated region
      $region9: #{crop_resize.1} parent=5 // pred_check
        _
      $region10: #{crop_resize.1} parent=5 // pred_check_branch
        %122 = sbr.rel (%p119) target = $region12
      $region11: #{crop_resize.1} parent=5 // pred_region
        %s123 = ssub.s32 %s15, 1
        // Predicated region
        $region13: #{crop_resize.1} parent=11 // pred_check
          %p124 = pneg %p62
        $region14: #{crop_resize.1} parent=11 // pred_check_branch
          %126 = sbr.rel (%p124) target = $region16
        $region15: #{crop_resize.1} parent=11 // pred_region
          _
        $region16: #{crop_resize.1} parent=11 // pred_fallthru
          _
        // Predicated region
        $region17: #{crop_resize.1} parent=11 // pred_check
          %p127 = pneg %p83
        $region18: #{crop_resize.1} parent=11 // pred_check_branch
          %129 = sbr.rel (%p127) target = $region20
        $region19: #{crop_resize.1} parent=11 // pred_region
          _
        $region20: #{crop_resize.1} parent=11 // pred_fallthru
          _
      $region12: #{crop_resize.1} parent=5 // pred_fallthru
        _
      %p130 = scmp.lt.s32.totalorder %s15, 2
      // Predicated region
      $region21: #{crop_resize.1} parent=5 // pred_check
        %p131 = pneg %p130
      $region22: #{crop_resize.1} parent=5 // pred_check_branch
        %133 = sbr.rel (%p131) target = $region24
      $region23: #{crop_resize.1} parent=5 // pred_region
        // Predicated region
        $region25: #{crop_resize.1} parent=23 // pred_check
          %p134 = pneg %p35
        $region26: #{crop_resize.1} parent=23 // pred_check_branch
          %136 = sbr.rel (%p134) target = $region28
        $region27: #{crop_resize.1} parent=23 // pred_region
          %s137 = sand.u32 %s25, 1
          %s138 = scalar_lea.sflag [#allocation3], %s137
          %s139 = sand.u32 %s25, 1
          %s140 = smul.addr %s139, 64
          %s141 = scalar_lea.vmem [#allocation2], %s140
          %s143 = ssub.s32 1024, 1024
          %144 = vsyncadd %s138, %s143
          %s145 = smul.addr %s15, 8
          %s146 = smul.addr %s145, 128
          %s147 = scalar_lea.hbm %s0, %s146
          %s148 = sshll.u32 %s141, 4
          %s149 = int_to_ptr.vmem [resolvable:$true] %s148
          %154 = dma.hbm_to_vmem [thread:$0]  %s147, 1024, %s149, %s138, 128, 128, 8
        $region28: #{crop_resize.1} parent=23 // pred_fallthru
          _
      $region24: #{crop_resize.1} parent=5 // pred_fallthru
        _
      %p155 = scmp.le.s32.totalorder 1, %s15
      %p156 = scmp.lt.s32.totalorder %s15, 3
      %p157 = pnand %p155, %p156
      %p158 = pneg %p157
      // Predicated region
      $region29: #{crop_resize.1} parent=5 // pred_check
        _
      $region30: #{crop_resize.1} parent=5 // pred_check_branch
        %160 = sbr.rel (%p157) target = $region32
      $region31: #{crop_resize.1} parent=5 // pred_region
        %s161 = ssub.s32 %s15, 1
        %s162 = sand.u32 %s28, 1
        %s163 = scalar_lea.sflag [#allocation3], %s162
        %s164 = sand.u32 %s28, 1
        %s165 = smul.addr %s164, 64
        %s166 = scalar_lea.vmem [#allocation2], %s165
        // Predicated region
        $region33: #{crop_resize.1} parent=31 // pred_check
          %p167 = pneg %p41
        $region34: #{crop_resize.1} parent=31 // pred_check_branch
          %169 = sbr.rel (%p167) target = $region36
        $region35: #{crop_resize.1} parent=31 // pred_region
          %170 = dma.done %s163, 1024
        $region36: #{crop_resize.1} parent=31 // pred_fallthru
          _
        %s171 = sand.u32 %s28, 1
        %s172 = scalar_lea.sflag [#allocation3], %s171
        %s173 = sand.u32 %s28, 1
        %s174 = smul.addr %s173, 64
        %s175 = scalar_lea.vmem [#allocation2], %s174
        %p176 = pneg %p41
        %p177 = pneg %p38
        %p178 = pneg %p62
        %p179 = pneg %p59
        %p180 = pneg %p83
        %p181 = pneg %p80
        %p182 = pneg %p109
        %p183 = pneg %p106
        %s184 = sand.u32 %s96, 1
        %s185 = scalar_lea.sflag [#allocation4], %s184
        %s186 = sand.u32 %s96, 1
        %s187 = smul.addr %s186, 64
        %s188 = scalar_lea.vmem [#allocation5], %s187
        %v190 = vld [vmem:[%s166] sm:$0xff]
        %v191 = vld [vmem:[%s166 + $0x8] sm:$0xff]
        %v192 = vld [vmem:[%s166 + $0x10] sm:$0xff]
        %v193 = vld [vmem:[%s166 + $0x18] sm:$0xff]
        %v194 = vld [vmem:[%s166 + $0x20] sm:$0xff]
        %v195 = vld [vmem:[%s166 + $0x28] sm:$0xff]
        %v196 = vld [vmem:[%s166 + $0x30] sm:$0xff]
        %v197 = vld [vmem:[%s166 + $0x38] sm:$0xff]
        %v198 = vpack.c.bf16 %v191, %v190
        %v199 = vpack.c.bf16 %v193, %v192
        %v200 = vpack.c.bf16 %v195, %v194
        %v201 = vpack.c.bf16 %v197, %v196
        %v202 = vld [vmem:[%s2] sm:$0xf]
        %v203 = vld [vmem:[%s2 + $0x4] sm:$0xf]
        %v206 = vunpack.c.l.b16 %v202
        %v207 = vunpack.c.l.b16 %v203
        %v208 = vpack.c.b16 %v207, %v206
        %vm210 = vcmask 130048
        %v212 = vsel %vm210, %v198, 0
        %v215 = vsel %vm210, %v199, 0
        %v218 = vsel %vm210, %v200, 0
        %v221 = vsel %vm210, %v201, 0
        %223 = vmatprep.subr.bf16.mxu0 0
        %224 = vmatpush1.bf16.msra.mxu0 0
        %225 = vmatprep.subr.bf16.mxu0 0
        %226 = vmatpush1.bf16.msra.mxu0 0
        %227 = vmatprep.subr.bf16.mxu0 0
        %228 = vmatpush1.bf16.msra.mxu0 0
        %229 = vmatprep.subr.bf16.mxu0 0
        %230 = vmatpush1.bf16.msra.mxu0 0
        %231 = vmatprep.subr.bf16.mxu0 0
        %232 = vmatpush1.bf16.msra.mxu0 0
        %233 = vmatprep.subr.bf16.mxu0 0
        %234 = vmatpush1.bf16.msra.mxu0 0
        %235 = vmatprep.subr.bf16.mxu0 0
        %236 = vmatpush1.bf16.msra.mxu0 0
        %237 = vmatprep.subr.bf16.mxu0 0
        %238 = vmatpush1.bf16.msra.mxu0 %v208
        %239 = vmatprep.subr.bf16.mxu0 0
        %240 = vmatpush2.bf16.msra.mxu0 0
        %241 = vmatprep.subr.bf16.mxu0 0
        %242 = vmatpush2.bf16.msra.mxu0 0
        %243 = vmatprep.subr.bf16.mxu0 0
        %244 = vmatpush2.bf16.msra.mxu0 0
        %245 = vmatprep.subr.bf16.mxu0 0
        %246 = vmatpush2.bf16.msra.mxu0 0
        %247 = vmatprep.subr.bf16.mxu0 0
        %248 = vmatpush2.bf16.msra.mxu0 0
        %249 = vmatprep.subr.bf16.mxu0 0
        %250 = vmatpush2.bf16.msra.mxu0 0
        %251 = vmatprep.subr.bf16.mxu0 0
        %252 = vmatpush2.bf16.msra.mxu0 0
        %253 = vmatprep.subr.bf16.mxu0 0
        %254 = vmatpush2.bf16.msra.mxu0 0
        %255 = vmatprep.mubr.bf16.mxu0 0
        %256 = vmatmul.mubr.bf16.gmra.mxu0 %v212
        %v257 = vpop.f32.mrf.mxu0
        %v258 = vadd.f32 0.0, %v257
        %v259 = vpop.f32.mrf.mxu0
        %v260 = vpop.f32.mrf.mxu0
        %v261 = vadd.f32 0.0, %v260
        %v262 = vpop.f32.mrf.mxu0
        %263 = vmatprep.mubr.bf16.mxu0 0
        %264 = vmatmul.mubr.bf16.gmra.mxu0 %v215
        %v265 = vpop.f32.mrf.mxu0
        %v266 = vadd.f32 0.0, %v265
        %v267 = vpop.f32.mrf.mxu0
        %v268 = vpop.f32.mrf.mxu0
        %v269 = vadd.f32 0.0, %v268
        %v270 = vpop.f32.mrf.mxu0
        %271 = vmatprep.mubr.bf16.mxu0 0
        %272 = vmatmul.mubr.bf16.gmra.mxu0 %v218
        %v273 = vpop.f32.mrf.mxu0
        %v274 = vadd.f32 0.0, %v273
        %v275 = vpop.f32.mrf.mxu0
        %v276 = vpop.f32.mrf.mxu0
        %v277 = vadd.f32 0.0, %v276
        %v278 = vpop.f32.mrf.mxu0
        %279 = vmatprep.mubr.bf16.mxu0 0
        %280 = vmatmul.mubr.bf16.gmra.mxu0 %v221
        %v281 = vpop.f32.mrf.mxu0
        %v282 = vadd.f32 0.0, %v281
        %v283 = vpop.f32.mrf.mxu0
        %v284 = vpop.f32.mrf.mxu0
        %v285 = vadd.f32 0.0, %v284
        %v286 = vpop.f32.mrf.mxu0
        %287 = vdwg.mxu0
        %v288 = vpack.c.bf16 %v261, %v258
        %v289 = vpack.c.bf16 %v269, %v266
        %v290 = vpack.c.bf16 %v277, %v274
        %v291 = vpack.c.bf16 %v285, %v282
        %v292 = vld [vmem:[%s1] sm:$0xf]
        %v293 = vld [vmem:[%s1 + $0x4] sm:$0xf]
        %v296 = vunpack.c.l.b16 %v292
        %v297 = vunpack.c.l.b16 %v293
        %v298 = vpack.c.b16 %v297, %v296
        %v300 = vsel %vm210, %v298, 0
        %302 = vmatprep.subr.bf16.mxu0 0
        %303 = vmatpush1.bf16.msra.mxu0 0
        %304 = vmatprep.subr.bf16.mxu0 0
        %305 = vmatpush1.bf16.msra.mxu0 0
        %306 = vmatprep.subr.bf16.mxu0 0
        %307 = vmatpush1.bf16.msra.mxu0 0
        %308 = vmatprep.subr.bf16.mxu0 0
        %309 = vmatpush1.bf16.msra.mxu0 0
        %310 = vmatprep.subr.bf16.mxu0 0
        %311 = vmatpush1.bf16.msra.mxu0 0
        %312 = vmatprep.subr.bf16.mxu0 0
        %313 = vmatpush1.bf16.msra.mxu0 0
        %314 = vmatprep.subr.bf16.mxu0 0
        %315 = vmatpush1.bf16.msra.mxu0 0
        %316 = vmatprep.subr.bf16.mxu0 0
        %317 = vmatpush1.bf16.msra.mxu0 %v288
        %318 = vmatprep.subr.bf16.mxu0 0
        %319 = vmatpush2.bf16.msra.mxu0 0
        %320 = vmatprep.subr.bf16.mxu0 0
        %321 = vmatpush2.bf16.msra.mxu0 0
        %322 = vmatprep.subr.bf16.mxu0 0
        %323 = vmatpush2.bf16.msra.mxu0 0
        %324 = vmatprep.subr.bf16.mxu0 0
        %325 = vmatpush2.bf16.msra.mxu0 0
        %326 = vmatprep.subr.bf16.mxu0 0
        %327 = vmatpush2.bf16.msra.mxu0 0
        %328 = vmatprep.subr.bf16.mxu0 0
        %329 = vmatpush2.bf16.msra.mxu0 0
        %330 = vmatprep.subr.bf16.mxu0 0
        %331 = vmatpush2.bf16.msra.mxu0 0
        %332 = vmatprep.subr.bf16.mxu0 0
        %333 = vmatpush2.bf16.msra.mxu0 0
        %334 = vmatprep.mubr.bf16.mxu0 0
        %335 = vmatmul.mubr.bf16.gmra.mxu0 %v300
        %v336 = vpop.f32.mrf.mxu0
        %v337 = vadd.f32 0.0, %v336
        %v338 = vpop.f32.mrf.mxu0
        %v339 = vpop.f32.mrf.mxu0
        %v340 = vadd.f32 0.0, %v339
        %v341 = vpop.f32.mrf.mxu0
        %342 = vdwg.mxu0
        %343 = vst.msk [vmem:[%s188] sm:$0xff] %vm210, %v337
        %344 = vst.msk [vmem:[%s188 + $0x8] sm:$0xff] %vm210, %v340
        %345 = vmatprep.subr.bf16.mxu0 0
        %346 = vmatpush1.bf16.msra.mxu0 0
        %347 = vmatprep.subr.bf16.mxu0 0
        %348 = vmatpush1.bf16.msra.mxu0 0
        %349 = vmatprep.subr.bf16.mxu0 0
        %350 = vmatpush1.bf16.msra.mxu0 0
        %351 = vmatprep.subr.bf16.mxu0 0
        %352 = vmatpush1.bf16.msra.mxu0 0
        %353 = vmatprep.subr.bf16.mxu0 0
        %354 = vmatpush1.bf16.msra.mxu0 0
        %355 = vmatprep.subr.bf16.mxu0 0
        %356 = vmatpush1.bf16.msra.mxu0 0
        %357 = vmatprep.subr.bf16.mxu0 0
        %358 = vmatpush1.bf16.msra.mxu0 0
        %359 = vmatprep.subr.bf16.mxu0 0
        %360 = vmatpush1.bf16.msra.mxu0 %v289
        %361 = vmatprep.subr.bf16.mxu0 0
        %362 = vmatpush2.bf16.msra.mxu0 0
        %363 = vmatprep.subr.bf16.mxu0 0
        %364 = vmatpush2.bf16.msra.mxu0 0
        %365 = vmatprep.subr.bf16.mxu0 0
        %366 = vmatpush2.bf16.msra.mxu0 0
        %367 = vmatprep.subr.bf16.mxu0 0
        %368 = vmatpush2.bf16.msra.mxu0 0
        %369 = vmatprep.subr.bf16.mxu0 0
        %370 = vmatpush2.bf16.msra.mxu0 0
        %371 = vmatprep.subr.bf16.mxu0 0
        %372 = vmatpush2.bf16.msra.mxu0 0
        %373 = vmatprep.subr.bf16.mxu0 0
        %374 = vmatpush2.bf16.msra.mxu0 0
        %375 = vmatprep.subr.bf16.mxu0 0
        %376 = vmatpush2.bf16.msra.mxu0 0
        %377 = vmatprep.mubr.bf16.mxu0 0
        %378 = vmatmul.mubr.bf16.gmra.mxu0 %v300
        %v379 = vpop.f32.mrf.mxu0
        %v380 = vadd.f32 0.0, %v379
        %v381 = vpop.f32.mrf.mxu0
        %v382 = vpop.f32.mrf.mxu0
        %v383 = vadd.f32 0.0, %v382
        %v384 = vpop.f32.mrf.mxu0
        %385 = vdwg.mxu0
        %s386 = scalar_lea.vmem %s188, 16 [#allocation5]
        %387 = vst.msk [vmem:[%s386] sm:$0xff] %vm210, %v380
        %388 = vst.msk [vmem:[%s386 + $0x8] sm:$0xff] %vm210, %v383
        %389 = vmatprep.subr.bf16.mxu0 0
        %390 = vmatpush1.bf16.msra.mxu0 0
        %391 = vmatprep.subr.bf16.mxu0 0
        %392 = vmatpush1.bf16.msra.mxu0 0
        %393 = vmatprep.subr.bf16.mxu0 0
        %394 = vmatpush1.bf16.msra.mxu0 0
        %395 = vmatprep.subr.bf16.mxu0 0
        %396 = vmatpush1.bf16.msra.mxu0 0
        %397 = vmatprep.subr.bf16.mxu0 0
        %398 = vmatpush1.bf16.msra.mxu0 0
        %399 = vmatprep.subr.bf16.mxu0 0
        %400 = vmatpush1.bf16.msra.mxu0 0
        %401 = vmatprep.subr.bf16.mxu0 0
        %402 = vmatpush1.bf16.msra.mxu0 0
        %403 = vmatprep.subr.bf16.mxu0 0
        %404 = vmatpush1.bf16.msra.mxu0 %v290
        %405 = vmatprep.subr.bf16.mxu0 0
        %406 = vmatpush2.bf16.msra.mxu0 0
        %407 = vmatprep.subr.bf16.mxu0 0
        %408 = vmatpush2.bf16.msra.mxu0 0
        %409 = vmatprep.subr.bf16.mxu0 0
        %410 = vmatpush2.bf16.msra.mxu0 0
        %411 = vmatprep.subr.bf16.mxu0 0
        %412 = vmatpush2.bf16.msra.mxu0 0
        %413 = vmatprep.subr.bf16.mxu0 0
        %414 = vmatpush2.bf16.msra.mxu0 0
        %415 = vmatprep.subr.bf16.mxu0 0
        %416 = vmatpush2.bf16.msra.mxu0 0
        %417 = vmatprep.subr.bf16.mxu0 0
        %418 = vmatpush2.bf16.msra.mxu0 0
        %419 = vmatprep.subr.bf16.mxu0 0
        %420 = vmatpush2.bf16.msra.mxu0 0
        %421 = vmatprep.mubr.bf16.mxu0 0
        %422 = vmatmul.mubr.bf16.gmra.mxu0 %v300
        %v423 = vpop.f32.mrf.mxu0
        %v424 = vadd.f32 0.0, %v423
        %v425 = vpop.f32.mrf.mxu0
        %v426 = vpop.f32.mrf.mxu0
        %v427 = vadd.f32 0.0, %v426
        %v428 = vpop.f32.mrf.mxu0
        %429 = vdwg.mxu0
        %s430 = scalar_lea.vmem %s188, 32 [#allocation5]
        %431 = vst.msk [vmem:[%s430] sm:$0xff] %vm210, %v424
        %432 = vst.msk [vmem:[%s430 + $0x8] sm:$0xff] %vm210, %v427
        %433 = vmatprep.subr.bf16.mxu0 0
        %434 = vmatpush1.bf16.msra.mxu0 0
        %435 = vmatprep.subr.bf16.mxu0 0
        %436 = vmatpush1.bf16.msra.mxu0 0
        %437 = vmatprep.subr.bf16.mxu0 0
        %438 = vmatpush1.bf16.msra.mxu0 0
        %439 = vmatprep.subr.bf16.mxu0 0
        %440 = vmatpush1.bf16.msra.mxu0 0
        %441 = vmatprep.subr.bf16.mxu0 0
        %442 = vmatpush1.bf16.msra.mxu0 0
        %443 = vmatprep.subr.bf16.mxu0 0
        %444 = vmatpush1.bf16.msra.mxu0 0
        %445 = vmatprep.subr.bf16.mxu0 0
        %446 = vmatpush1.bf16.msra.mxu0 0
        %447 = vmatprep.subr.bf16.mxu0 0
        %448 = vmatpush1.bf16.msra.mxu0 %v291
        %449 = vmatprep.subr.bf16.mxu0 0
        %450 = vmatpush2.bf16.msra.mxu0 0
        %451 = vmatprep.subr.bf16.mxu0 0
        %452 = vmatpush2.bf16.msra.mxu0 0
        %453 = vmatprep.subr.bf16.mxu0 0
        %454 = vmatpush2.bf16.msra.mxu0 0
        %455 = vmatprep.subr.bf16.mxu0 0
        %456 = vmatpush2.bf16.msra.mxu0 0
        %457 = vmatprep.subr.bf16.mxu0 0
        %458 = vmatpush2.bf16.msra.mxu0 0
        %459 = vmatprep.subr.bf16.mxu0 0
        %460 = vmatpush2.bf16.msra.mxu0 0
        %461 = vmatprep.subr.bf16.mxu0 0
        %462 = vmatpush2.bf16.msra.mxu0 0
        %463 = vmatprep.subr.bf16.mxu0 0
        %464 = vmatpush2.bf16.msra.mxu0 0
        %465 = vmatprep.mubr.bf16.mxu0 0
        %466 = vmatmul.mubr.bf16.gmra.mxu0 %v300
        %v467 = vpop.f32.mrf.mxu0
        %v468 = vadd.f32 0.0, %v467
        %v469 = vpop.f32.mrf.mxu0
        %v470 = vpop.f32.mrf.mxu0
        %v471 = vadd.f32 0.0, %v470
        %v472 = vpop.f32.mrf.mxu0
        %473 = vdwg.mxu0
        %s474 = scalar_lea.vmem %s188, 48 [#allocation5]
        %475 = vst.msk [vmem:[%s474] sm:$0xff] %vm210, %v468
        %476 = vst.msk [vmem:[%s474 + $0x8] sm:$0xff] %vm210, %v471
        %s477 = sand.u32 %s96, 1
        %s478 = scalar_lea.sflag [#allocation4], %s477
        %s479 = sand.u32 %s96, 1
        %s480 = smul.addr %s479, 64
        %s481 = scalar_lea.vmem [#allocation5], %s480
        // Predicated region
        $region37: #{crop_resize.1} parent=31 // pred_check
          %p482 = pneg %p106
        $region38: #{crop_resize.1} parent=31 // pred_check_branch
          %484 = sbr.rel (%p482) target = $region40
        $region39: #{crop_resize.1} parent=31 // pred_region
          %s486 = ssub.s32 1024, 1024
          %487 = vsyncadd %s478, %s486
          %s488 = smul.addr %s20, 8
          %s489 = smul.addr %s488, 128
          %s490 = scalar_lea.hbm %s3, %s489
          %s491 = sshll.u32 %s481, 4
          %s492 = int_to_ptr.vmem [resolvable:$true] %s491
          %497 = dma.vmem_to_hbm [thread:$0]  %s492, 1024, %s490, %s478, 128, 128, 8
        $region40: #{crop_resize.1} parent=31 // pred_fallthru
          _
      $region32: #{crop_resize.1} parent=5 // pred_fallthru
        _
      %p498 = scmp.le.s32.totalorder 2, %s15
      // Predicated region
      $region41: #{crop_resize.1} parent=5 // pred_check
        %p499 = pneg %p498
      $region42: #{crop_resize.1} parent=5 // pred_check_branch
        %501 = sbr.rel (%p499) target = $region44
      $region43: #{crop_resize.1} parent=5 // pred_region
        %s502 = ssub.s32 %s15, 2
        // Predicated region
        $region45: #{crop_resize.1} parent=43 // pred_check
          %p503 = pneg %p112
        $region46: #{crop_resize.1} parent=43 // pred_check_branch
          %505 = sbr.rel (%p503) target = $region48
        $region47: #{crop_resize.1} parent=43 // pred_region
          %s506 = sand.u32 %s97, 1
          %s507 = scalar_lea.sflag [#allocation4], %s506
          %s508 = sand.u32 %s97, 1
          %s509 = smul.addr %s508, 64
          %s510 = scalar_lea.vmem [#allocation5], %s509
          %511 = dma.done %s507, 1024
        $region48: #{crop_resize.1} parent=43 // pred_fallthru
          _
      $region44: #{crop_resize.1} parent=5 // pred_fallthru
        _
    $region6: #{crop_resize.1} parent=1 // loop_footer
      %s19 = sadd.s32 1, %s15
    $region7: #{crop_resize.1} parent=1 // loop_footer_branch
      %14 = sbr.rel target = $region3
    $region8: #{crop_resize.1} parent=1 // loop_exit
      _
    %512 = vsyncpa [#allocation3], 1
    %s513 = scalar_lea.sflag [#allocation3], 1
    %514 = vsyncpa %s513, 1
    %515 = vsyncpa [#allocation4], 1
    %s516 = scalar_lea.sflag [#allocation4], 1
    %517 = vsyncpa %s516, 1

</llo_original>
